<compile_context>
chip_gen: v6e
topology: v6e:2x2x1
jax: 0.10.0
libtpu: 0.0.40
codegen_flags: <defaults>
</compile_context>

<pallas_src>
import jax
import jax.numpy as jnp
from jax.experimental import pallas as pl
from jax.experimental.pallas import tpu as pltpu

C_IN = 4          # input channels
OUT_DIM = 32      # net.out_dim
H = 16
W = 16
KH = KW = 3
K_RAW = KH * KW * C_IN   # 36  (im2col contraction size)
K_PAD = 40               # 36 taps + 1 bias-carrier column + 3 zero cols (multiple of 8)
OUTP = 128               # lane-dense output width (real data in the first 32 cols)
MAX_BS = 64              # FeatureExtractor(max_bs=64) default (subsumed by the grid)


def _conv_relu_gap_kernel(x_ref, w_ref, o_ref):
    # x_ref: (bs*H*W, K_PAD) bf16 — im2col rows; column K_RAW is the constant-1 bias carrier.
    # w_ref: (K_PAD, OUTP)   bf16 — packed conv weight; row K_RAW holds the bias.
    # o_ref: (bs, OUTP)      f32  — GAP(ReLU(conv(x))) per image.
    bs = o_ref.shape[0]
    w = w_ref[...]                                    # load once, hoisted out of the loop

    def per_image(i, carry):
        row0 = pl.multiple_of(i * (H * W), H * W)
        act = jnp.dot(x_ref[pl.ds(row0, H * W), :], w,
                      preferred_element_type=jnp.float32)           # (256, OUTP) f32, in vregs
        act = jnp.maximum(act, 0.0)                                  # ReLU (bias already folded)
        # AdaptiveAvgPool2d((1,1)) + flatten(1): mean over this image's H*W rows.
        o_ref[pl.ds(i, 1), :] = jnp.mean(act, axis=0, keepdims=True)
        return carry

    jax.lax.fori_loop(0, bs, per_image, 0)


def _round_up(x, m):
    return -(-x // m) * m


def _pick_batch_tile(B):
    """Pad batch to a sublane-friendly size; pick images-per-grid-step.

    Aims for >= 2 grid steps (both v7x TensorCores get a block; ~0.35 us extra on
    single-TC v5e/v6e) with tiles of up to 64 images (block stays well inside the
    default scoped-VMEM limit on every chip).
    """
    Bp = _round_up(max(B, 1), 8)
    if Bp <= 8:
        bs_tile = Bp
    else:
        bs_tile = min(64, _round_up(Bp // 2, 8))
    Bp = _round_up(Bp, bs_tile)
    return Bp, bs_tile


def _features_gap_impl(x_nchw, weight, bias):
    """features(x) -> GAP -> flatten(1) for a 4-D NCHW batch."""
    B = x_nchw.shape[0]
    Bp, bs_tile = _pick_batch_tile(B)

    # NCHW -> NHWC, 'SAME' zero padding for the 3x3 conv.
    x_nhwc = jnp.transpose(x_nchw, (0, 2, 3, 1)).astype(jnp.float32)
    x_pad = jnp.pad(x_nhwc, ((0, 0), (1, 1), (1, 1), (0, 0)))

    # Wrapper-side im2col: tap order kh*KW + kw, channels innermost (matches the synthetic
    # (KH*KW, C_IN, OUT_DIM) weight layout).
    # TODO(synk): a real PyTorch Conv2d weight is (O, I, kh, kw) and needs an explicit
    # transpose to (kh, kw, I, O) before packing here.
    cols = [x_pad[:, kh:kh + H, kw:kw + W, :] for kh in range(KH) for kw in range(KW)]
    patches = jnp.concatenate(cols, axis=-1).reshape(B * H * W, K_RAW)       # (B*256, 36)
    ones_col = jnp.ones((B * H * W, 1), jnp.float32)                         # bias carrier
    patches = jnp.concatenate([patches, ones_col], axis=-1)                  # (B*256, 37)
    patches = jnp.pad(patches, ((0, (Bp - B) * H * W), (0, K_PAD - K_RAW - 1)))
    patches = patches.astype(jnp.bfloat16)                                   # (Bp*256, 40)

    w_aug = jnp.concatenate([weight.reshape(K_RAW, OUT_DIM),
                             bias.reshape(1, OUT_DIM)], axis=0)              # (37, 32)
    w_packed = jnp.pad(w_aug, ((0, K_PAD - K_RAW - 1), (0, OUTP - OUT_DIM)))
    w_packed = w_packed.astype(jnp.bfloat16)                                 # (40, 128)

    rows_per_tile = bs_tile * H * W
    out = pl.pallas_call(
        _conv_relu_gap_kernel,
        out_shape=jax.ShapeDtypeStruct((Bp, OUTP), jnp.float32),
        grid=(Bp // bs_tile,),
        in_specs=[
            # Last block dim (40) equals the full array extent -> legal and unpadded in HBM.
            pl.BlockSpec((rows_per_tile, K_PAD), lambda i: (i, 0)),
            pl.BlockSpec((K_PAD, OUTP), lambda i: (0, 0)),
        ],
        out_specs=pl.BlockSpec((bs_tile, OUTP), lambda i: (i, 0)),
        compiler_params=pltpu.CompilerParams(
            dimension_semantics=("parallel",)),
    )(patches, w_packed)

    return out[:B, :OUT_DIM]


_features_gap = jax.jit(_features_gap_impl)


def feature_extractor_forward(x, weight, bias, max_bs=MAX_BS):
    """Reproduces FeatureExtractor.forward for 4-D (B,C,H,W) and 5-D (N,mn,C,H,W) inputs.

    `max_bs` is kept for API parity; the Pallas grid tiles the batch internally, so the
    PyTorch per-chunk Python loop (and its per-chunk dispatch / recompiles) is unnecessary.
    """
    del max_bs
    if x.ndim == 5:
        N, mn, c, h, w = x.shape
        fv_flat = _features_gap(x.reshape(N * mn, c, h, w), weight, bias)    # (N*mn, OUT_DIM)
        feature = jnp.transpose(fv_flat.reshape(N, mn, mn, -1), (0, 3, 1, 2))
    elif x.ndim == 4:
        feature = _features_gap(x, weight, bias)
    else:
        raise ValueError("expected 4-D or 5-D input")
    return feature


def _ref_features_gap(x_nchw, weight, bias):
    """Pure-JAX reference for the fused conv+relu+gap path (full f32 precision)."""
    w_oihw = jnp.transpose(weight.reshape(KH, KW, C_IN, OUT_DIM), (3, 2, 0, 1))
    y = jax.lax.conv_general_dilated(
        x_nchw, w_oihw, window_strides=(1, 1), padding="SAME",
        dimension_numbers=("NCHW", "OIHW", "NCHW"),
        precision=jax.lax.Precision.HIGHEST)
    y = jnp.maximum(y + bias.reshape(1, OUT_DIM, 1, 1), 0.0)
    return jnp.mean(y, axis=(2, 3))


if __name__ == "__main__":
    key = jax.random.PRNGKey(0)
    kx4, kx5, kw, kb = jax.random.split(key, 4)

    # Deterministic synthetic encoder parameters (Conv2d(C_IN, OUT_DIM, 3, padding=1)).
    weight = jax.random.normal(kw, (KH * KW, C_IN, OUT_DIM), jnp.float32) * 0.1
    bias = jax.random.normal(kb, (1, OUT_DIM), jnp.float32) * 0.1

    # 4-D branch: x (B=2, C=4, H=16, W=16) -> (2, OUT_DIM)
    x4 = jax.random.normal(kx4, (2, C_IN, H, W), jnp.float32)
    f4 = feature_extractor_forward(x4, weight, bias)
    jax.block_until_ready(f4)
    assert f4.shape == (2, OUT_DIM), f4.shape
    ref4 = _ref_features_gap(x4, weight, bias)
    # bf16 operands + f32 accumulation vs. HIGHEST-precision reference -> looser tolerance.
    assert jnp.allclose(f4, ref4, atol=2e-2, rtol=2e-2), float(jnp.max(jnp.abs(f4 - ref4)))

    # 5-D branch: x (N=2, mn=2, C=4, H=16, W=16) -> (N, OUT_DIM//mn, mn, mn) = (2, 16, 2, 2)
    x5 = jax.random.normal(kx5, (2, 2, C_IN, H, W), jnp.float32)
    f5 = feature_extractor_forward(x5, weight, bias)
    jax.block_until_ready(f5)
    assert f5.shape == (2, OUT_DIM // 2, 2, 2), f5.shape
    ref5 = jnp.transpose(
        _ref_features_gap(x5.reshape(4, C_IN, H, W), weight, bias).reshape(2, 2, 2, -1),
        (0, 3, 1, 2))
    assert jnp.allclose(f5, ref5, atol=2e-2, rtol=2e-2), float(jnp.max(jnp.abs(f5 - ref5)))

    print("KERNEL_OK")
</pallas_src>

<mosaic_0001>
module attributes {stable_mosaic.version = 11 : i64} {
  func.func @_conv_relu_gap_kernel(%arg0: i32, %arg1: memref<2048x40xbf16, #tpu.memory_space<vmem>>, %arg2: memref<40x128xbf16, #tpu.memory_space<vmem>>, %arg3: memref<8x128xf32, #tpu.memory_space<vmem>>) attributes {dimension_semantics = [#tpu.dimension_semantics<parallel>], iteration_bounds = array<i64: 1>, scalar_prefetch = 0 : i64, scratch_operands = 0 : i64, tpu.core_type = #tpu.core_type<tc>, window_params = [{transform_indices = @transform_0, window_bounds = array<i64: 2048, 40>}, {pipeline_mode = #tpu.pipeline_mode<synchronous>, transform_indices = @transform_1, window_bounds = array<i64: 40, 128>}, {transform_indices = @transform_2, window_bounds = array<i64: 8, 128>}]} {
    %c0 = arith.constant 0 : index
    %c0_0 = arith.constant 0 : index
    %0 = vector.load %arg2[%c0, %c0_0] : memref<40x128xbf16, #tpu.memory_space<vmem>>, vector<40x128xbf16>
    %c0_i32 = arith.constant 0 : i32
    %c8_i32 = arith.constant 8 : i32
    %1 = arith.addi %c0_i32, %c8_i32 : i32
    %c1_i32 = arith.constant 1 : i32
    scf.for %arg4 = %c0_i32 to %1 step %c1_i32  : i32 {
      %c256_i32 = arith.constant 256 : i32
      %2 = arith.muli %arg4, %c256_i32 : i32
      %3 = tpu.assume_multiple %2, 256 : i32
      %4 = arith.index_cast %3 : i32 to index
      %c0_2 = arith.constant 0 : index
      %5 = vector.load %arg1[%4, %c0_2] : memref<2048x40xbf16, #tpu.memory_space<vmem>>, vector<256x40xbf16>
      %cst = arith.constant dense<0.000000e+00> : vector<256x128xf32>
      %6 = tpu.matmul %5, %0, %cst {dimension_numbers = #tpu.dot_dimension_numbers<[1], [0], [0], [1], [0, 0, 1, 1], [], []>} : vector<256x40xbf16>, vector<40x128xbf16>, vector<256x128xf32> -> vector<256x128xf32>
      %cst_3 = arith.constant 0.000000e+00 : f32
      %7 = vector.broadcast %cst_3 : f32 to vector<256x128xf32>
      %8 = arith.maximumf %6, %7 : vector<256x128xf32>
      %cst_4 = arith.constant dense<0.000000e+00> : vector<128xf32>
      %9 = vector.multi_reduction <add>, %8, %cst_4 [0] : vector<256x128xf32> to vector<128xf32>
      %10 = vector.shape_cast %9 : vector<128xf32> to vector<1x128xf32>
      %cst_5 = arith.constant 2.560000e+02 : f32
      %11 = vector.broadcast %cst_5 : f32 to vector<1x128xf32>
      %12 = arith.divf %10, %11 : vector<1x128xf32>
      %13 = arith.index_cast %arg4 : i32 to index
      %c0_6 = arith.constant 0 : index
      %14 = vector.load %arg3[%13, %c0_6] : memref<8x128xf32, #tpu.memory_space<vmem>>, vector<1x128xf32>
      tpu.vector_store %arg3[%13, %c0_6], %12 {strides = array<i32>} : memref<8x128xf32, #tpu.memory_space<vmem>>, vector<1x128xf32>,
    }
    %c8_i32_1 = arith.constant 8 : i32
    return
  }
  func.func @transform_0(%arg0: i32) -> (i32, i32) {
    %c0_i32 = arith.constant 0 : i32
    %c0_i32_0 = arith.constant 0 : i32
    return %arg0, %c0_i32 : i32, i32
  }
  func.func @transform_1(%arg0: i32) -> (i32, i32) {
    %c0_i32 = arith.constant 0 : i32
    %c0_i32_0 = arith.constant 0 : i32
    %c0_i32_1 = arith.constant 0 : i32
    return %c0_i32, %c0_i32_0 : i32, i32
  }
  func.func @transform_2(%arg0: i32) -> (i32, i32) {
    %c0_i32 = arith.constant 0 : i32
    %c0_i32_0 = arith.constant 0 : i32
    return %arg0, %c0_i32 : i32, i32
  }
}

</mosaic_0001>

<llo_original>
// kernel: _features_gap_impl.1
$region0: #{_features_gap_impl.1}
  #allocation0 [shape = 'u32[]', space=smem, size = 0x4, offset = 0x4, fixed_abs, tag = 'smem constant byte address 0x4 - core index']
  #allocation1 [shape = 'u32[144,128]{1,0:T(1,128)}', space=vmem, size = 0x12000, scoped, tag = 'internal scratch']
  %s0 = inlined_call_operand.vmem [shape: bf16[2048,40], index: 0, kind: input, shape index: {}]
  %s1 = inlined_call_operand.vmem [shape: bf16[40,128], index: 1, kind: input, shape index: {}]
  %s2 = inlined_call_operand.vmem [shape: f32[8,128], index: 2, kind: output, shape index: {}]
  %s3 = sld [smem:[#allocation0]]
  $region25: #{_features_gap_impl.1} parent=0
    _
  %s5 = ssub.s32 1, %s3
  %s6 = scalar_select 0, %s5, %s3
  // Predicated region
  $region2: #{_features_gap_impl.1} parent=0 // pred_check
    _
  $region3: #{_features_gap_impl.1} parent=0 // pred_check_branch
    %8 = sbr.rel (0) target = $region5
  $region4: #{_features_gap_impl.1} parent=0 // pred_region
    _
  $region5: #{_features_gap_impl.1} parent=0 // pred_fallthru
    _
  // Predicated region
  $region6: #{_features_gap_impl.1} parent=0 // pred_check
    _
  $region7: #{_features_gap_impl.1} parent=0 // pred_check_branch
    %10 = sbr.rel (0) target = $region9
  $region8: #{_features_gap_impl.1} parent=0 // pred_region
    _
  $region9: #{_features_gap_impl.1} parent=0 // pred_fallthru
    _
  %v12 = vld [vmem:[%s1] sm:$0xf]
  %v13 = vld [vmem:[%s1 + $0x4] sm:$0xf]
  %v14 = vld [vmem:[%s1 + $0x8] sm:$0xf]
  %v15 = vld [vmem:[%s1 + $0xc] sm:$0xf]
  %v16 = vld [vmem:[%s1 + $0x10] sm:$0xf]
  loop: start=0, step=1, limit=8
  $region10: #{_features_gap_impl.1} parent=0 // loop_pre_header
    _
  $region11: #{_features_gap_impl.1} parent=0 // loop_header
    %s18 = sphi 0, %s22
    %p19 = scmp.ge.s32.totalorder %s18, 8
  $region12: #{_features_gap_impl.1} parent=0 // loop_header_branch
    %21 = sbr.rel (%p19) target = $region16
  $region13: #{_features_gap_impl.1} parent=0 // loop_body
    %s23 = smul.u32 %s18, 256
    %s24 = sshra.s32 %s23, 3
    %s25 = sand.u32 %s23, 7
    %s26 = smul.addr %s24, 4
    %s27 = scalar_lea.vmem %s0, %s26
    %v28 = vld [vmem:[%s27] sm:$0xf]
    %v29 = vld [vmem:[%s27 + $0x4] sm:$0xf]
    %v30 = vld [vmem:[%s27 + $0x8] sm:$0xf]
    %v31 = vld [vmem:[%s27 + $0xc] sm:$0xf]
    %v32 = vld [vmem:[%s27 + $0x10] sm:$0xf]
    %v33 = vld [vmem:[%s27 + $0x14] sm:$0xf]
    %v34 = vld [vmem:[%s27 + $0x18] sm:$0xf]
    %v35 = vld [vmem:[%s27 + $0x1c] sm:$0xf]
    %v36 = vld [vmem:[%s27 + $0x20] sm:$0xf]
    %v37 = vld [vmem:[%s27 + $0x24] sm:$0xf]
    %v38 = vld [vmem:[%s27 + $0x28] sm:$0xf]
    %v39 = vld [vmem:[%s27 + $0x2c] sm:$0xf]
    %v40 = vld [vmem:[%s27 + $0x30] sm:$0xf]
    %v41 = vld [vmem:[%s27 + $0x34] sm:$0xf]
    %v42 = vld [vmem:[%s27 + $0x38] sm:$0xf]
    %v43 = vld [vmem:[%s27 + $0x3c] sm:$0xf]
    %v44 = vld [vmem:[%s27 + $0x40] sm:$0xf]
    %v45 = vld [vmem:[%s27 + $0x44] sm:$0xf]
    %v46 = vld [vmem:[%s27 + $0x48] sm:$0xf]
    %v47 = vld [vmem:[%s27 + $0x4c] sm:$0xf]
    %v48 = vld [vmem:[%s27 + $0x50] sm:$0xf]
    %v49 = vld [vmem:[%s27 + $0x54] sm:$0xf]
    %v50 = vld [vmem:[%s27 + $0x58] sm:$0xf]
    %v51 = vld [vmem:[%s27 + $0x5c] sm:$0xf]
    %v52 = vld [vmem:[%s27 + $0x60] sm:$0xf]
    %v53 = vld [vmem:[%s27 + $0x64] sm:$0xf]
    %v54 = vld [vmem:[%s27 + $0x68] sm:$0xf]
    %v55 = vld [vmem:[%s27 + $0x6c] sm:$0xf]
    %v56 = vld [vmem:[%s27 + $0x70] sm:$0xf]
    %v57 = vld [vmem:[%s27 + $0x74] sm:$0xf]
    %v58 = vld [vmem:[%s27 + $0x78] sm:$0xf]
    %v59 = vld [vmem:[%s27 + $0x7c] sm:$0xf]
    %v92 = vunpack.c.l.b16 %v28
    %v93 = vunpack.c.l.b16 %v29
    %v94 = vunpack.c.l.b16 %v30
    %v95 = vunpack.c.l.b16 %v31
    %v96 = vunpack.c.l.b16 %v32
    %v97 = vunpack.c.l.b16 %v33
    %v98 = vunpack.c.l.b16 %v34
    %v99 = vunpack.c.l.b16 %v35
    %v100 = vunpack.c.l.b16 %v36
    %v101 = vunpack.c.l.b16 %v37
    %v102 = vunpack.c.l.b16 %v38
    %v103 = vunpack.c.l.b16 %v39
    %v104 = vunpack.c.l.b16 %v40
    %v105 = vunpack.c.l.b16 %v41
    %v106 = vunpack.c.l.b16 %v42
    %v107 = vunpack.c.l.b16 %v43
    %v108 = vunpack.c.l.b16 %v44
    %v109 = vunpack.c.l.b16 %v45
    %v110 = vunpack.c.l.b16 %v46
    %v111 = vunpack.c.l.b16 %v47
    %v112 = vunpack.c.l.b16 %v48
    %v113 = vunpack.c.l.b16 %v49
    %v114 = vunpack.c.l.b16 %v50
    %v115 = vunpack.c.l.b16 %v51
    %v116 = vunpack.c.l.b16 %v52
    %v117 = vunpack.c.l.b16 %v53
    %v118 = vunpack.c.l.b16 %v54
    %v119 = vunpack.c.l.b16 %v55
    %v120 = vunpack.c.l.b16 %v56
    %v121 = vunpack.c.l.b16 %v57
    %v122 = vunpack.c.l.b16 %v58
    %v123 = vunpack.c.l.b16 %v59
    %v124 = vpack.c.b16 %v93, %v92
    %v125 = vpack.c.b16 %v95, %v94
    %v126 = vpack.c.b16 %v97, %v96
    %v127 = vpack.c.b16 %v99, %v98
    %v128 = vpack.c.b16 %v101, %v100
    %v129 = vpack.c.b16 %v103, %v102
    %v130 = vpack.c.b16 %v105, %v104
    %v131 = vpack.c.b16 %v107, %v106
    %v132 = vpack.c.b16 %v109, %v108
    %v133 = vpack.c.b16 %v111, %v110
    %v134 = vpack.c.b16 %v113, %v112
    %v135 = vpack.c.b16 %v115, %v114
    %v136 = vpack.c.b16 %v117, %v116
    %v137 = vpack.c.b16 %v119, %v118
    %v138 = vpack.c.b16 %v121, %v120
    %v139 = vpack.c.b16 %v123, %v122
    %v145 = vunpack.c.l.b16 %v12
    %v146 = vunpack.c.l.b16 %v13
    %v147 = vunpack.c.l.b16 %v14
    %v148 = vunpack.c.l.b16 %v15
    %v149 = vunpack.c.l.b16 %v16
    %v150 = vpack.c.b16 %v146, %v145
    %v151 = vpack.c.b16 %v148, %v147
    %v152 = vpack.c.b16 %v149, %v149
    %vm155 = vcmask 326656
    %v157 = vsel %vm155, %v124, 0
    %v160 = vsel %vm155, %v125, 0
    %v163 = vsel %vm155, %v126, 0
    %v166 = vsel %vm155, %v127, 0
    %v169 = vsel %vm155, %v128, 0
    %v172 = vsel %vm155, %v129, 0
    %v175 = vsel %vm155, %v130, 0
    %v178 = vsel %vm155, %v131, 0
    %v181 = vsel %vm155, %v132, 0
    %v184 = vsel %vm155, %v133, 0
    %v187 = vsel %vm155, %v134, 0
    %v190 = vsel %vm155, %v135, 0
    %v193 = vsel %vm155, %v136, 0
    %v196 = vsel %vm155, %v137, 0
    %v199 = vsel %vm155, %v138, 0
    %v202 = vsel %vm155, %v139, 0
    %vm204 = vcmask 1043456
    %v206 = vsel %vm204, %v152, 0
    %208 = vmatprep.subr.bf16.mxu0 0
    %209 = vmatpush1.bf16.msra.mxu0 0
    %210 = vmatprep.subr.bf16.mxu0 0
    %211 = vmatpush1.bf16.msra.mxu0 0
    %212 = vmatprep.subr.bf16.mxu0 0
    %213 = vmatpush1.bf16.msra.mxu0 0
    %214 = vmatprep.subr.bf16.mxu0 0
    %215 = vmatpush1.bf16.msra.mxu0 0
    %216 = vmatprep.subr.bf16.mxu0 0
    %217 = vmatpush1.bf16.msra.mxu0 0
    %218 = vmatprep.subr.bf16.mxu0 0
    %219 = vmatpush1.bf16.msra.mxu0 %v206
    %220 = vmatprep.subr.bf16.mxu0 0
    %221 = vmatpush1.bf16.msra.mxu0 %v151
    %222 = vmatprep.subr.bf16.mxu0 0
    %223 = vmatpush1.bf16.msra.mxu0 %v150
    %224 = vmatprep.subr.bf16.mxu0 0
    %225 = vmatpush2.bf16.msra.mxu0 0
    %226 = vmatprep.subr.bf16.mxu0 0
    %227 = vmatpush2.bf16.msra.mxu0 0
    %228 = vmatprep.subr.bf16.mxu0 0
    %229 = vmatpush2.bf16.msra.mxu0 0
    %230 = vmatprep.subr.bf16.mxu0 0
    %231 = vmatpush2.bf16.msra.mxu0 0
    %232 = vmatprep.subr.bf16.mxu0 0
    %233 = vmatpush2.bf16.msra.mxu0 0
    %234 = vmatprep.subr.bf16.mxu0 0
    %235 = vmatpush2.bf16.msra.mxu0 0
    %236 = vmatprep.subr.bf16.mxu0 0
    %237 = vmatpush2.bf16.msra.mxu0 0
    %238 = vmatprep.subr.bf16.mxu0 0
    %239 = vmatpush2.bf16.msra.mxu0 0
    %240 = vmatprep.mubr.bf16.mxu0 0
    %241 = vmatmul.mubr.bf16.gmra.mxu0 %v157
    %v242 = vpop.f32.mrf.mxu0
    %v243 = vadd.f32 0.0, %v242
    %v244 = vpop.f32.mrf.mxu0
    %v245 = vpop.f32.mrf.mxu0
    %v246 = vadd.f32 0.0, %v245
    %v247 = vpop.f32.mrf.mxu0
    %248 = vmatprep.mubr.bf16.mxu0 0
    %249 = vmatmul.mubr.bf16.gmra.mxu0 %v160
    %v250 = vpop.f32.mrf.mxu0
    %v251 = vadd.f32 0.0, %v250
    %v252 = vpop.f32.mrf.mxu0
    %v253 = vpop.f32.mrf.mxu0
    %v254 = vadd.f32 0.0, %v253
    %v255 = vpop.f32.mrf.mxu0
    %256 = vmatprep.mubr.bf16.mxu0 0
    %257 = vmatmul.mubr.bf16.gmra.mxu0 %v163
    %v258 = vpop.f32.mrf.mxu0
    %v259 = vadd.f32 0.0, %v258
    %v260 = vpop.f32.mrf.mxu0
    %v261 = vpop.f32.mrf.mxu0
    %v262 = vadd.f32 0.0, %v261
    %v263 = vpop.f32.mrf.mxu0
    %264 = vmatprep.mubr.bf16.mxu0 0
    %265 = vmatmul.mubr.bf16.gmra.mxu0 %v166
    %v266 = vpop.f32.mrf.mxu0
    %v267 = vadd.f32 0.0, %v266
    %v268 = vpop.f32.mrf.mxu0
    %v269 = vpop.f32.mrf.mxu0
    %v270 = vadd.f32 0.0, %v269
    %v271 = vpop.f32.mrf.mxu0
    %272 = vmatprep.mubr.bf16.mxu0 0
    %273 = vmatmul.mubr.bf16.gmra.mxu0 %v169
    %v274 = vpop.f32.mrf.mxu0
    %v275 = vadd.f32 0.0, %v274
    %v276 = vpop.f32.mrf.mxu0
    %v277 = vpop.f32.mrf.mxu0
    %v278 = vadd.f32 0.0, %v277
    %v279 = vpop.f32.mrf.mxu0
    %280 = vmatprep.mubr.bf16.mxu0 0
    %281 = vmatmul.mubr.bf16.gmra.mxu0 %v172
    %v282 = vpop.f32.mrf.mxu0
    %v283 = vadd.f32 0.0, %v282
    %v284 = vpop.f32.mrf.mxu0
    %v285 = vpop.f32.mrf.mxu0
    %v286 = vadd.f32 0.0, %v285
    %v287 = vpop.f32.mrf.mxu0
    %288 = vmatprep.mubr.bf16.mxu0 0
    %289 = vmatmul.mubr.bf16.gmra.mxu0 %v175
    %v290 = vpop.f32.mrf.mxu0
    %v291 = vadd.f32 0.0, %v290
    %v292 = vpop.f32.mrf.mxu0
    %v293 = vpop.f32.mrf.mxu0
    %v294 = vadd.f32 0.0, %v293
    %v295 = vpop.f32.mrf.mxu0
    %296 = vmatprep.mubr.bf16.mxu0 0
    %297 = vmatmul.mubr.bf16.gmra.mxu0 %v178
    %v298 = vpop.f32.mrf.mxu0
    %v299 = vadd.f32 0.0, %v298
    %v300 = vpop.f32.mrf.mxu0
    %v301 = vpop.f32.mrf.mxu0
    %v302 = vadd.f32 0.0, %v301
    %v303 = vpop.f32.mrf.mxu0
    %304 = vmatprep.mubr.bf16.mxu0 0
    %305 = vmatmul.mubr.bf16.gmra.mxu0 %v181
    %v306 = vpop.f32.mrf.mxu0
    %v307 = vadd.f32 0.0, %v306
    %v308 = vpop.f32.mrf.mxu0
    %v309 = vpop.f32.mrf.mxu0
    %v310 = vadd.f32 0.0, %v309
    %v311 = vpop.f32.mrf.mxu0
    %312 = vmatprep.mubr.bf16.mxu0 0
    %313 = vmatmul.mubr.bf16.gmra.mxu0 %v184
    %v314 = vpop.f32.mrf.mxu0
    %v315 = vadd.f32 0.0, %v314
    %v316 = vpop.f32.mrf.mxu0
    %v317 = vpop.f32.mrf.mxu0
    %v318 = vadd.f32 0.0, %v317
    %v319 = vpop.f32.mrf.mxu0
    %320 = vmatprep.mubr.bf16.mxu0 0
    %321 = vmatmul.mubr.bf16.gmra.mxu0 %v187
    %v322 = vpop.f32.mrf.mxu0
    %v323 = vadd.f32 0.0, %v322
    %v324 = vpop.f32.mrf.mxu0
    %v325 = vpop.f32.mrf.mxu0
    %v326 = vadd.f32 0.0, %v325
    %v327 = vpop.f32.mrf.mxu0
    %328 = vmatprep.mubr.bf16.mxu0 0
    %329 = vmatmul.mubr.bf16.gmra.mxu0 %v190
    %v330 = vpop.f32.mrf.mxu0
    %v331 = vadd.f32 0.0, %v330
    %v332 = vpop.f32.mrf.mxu0
    %v333 = vpop.f32.mrf.mxu0
    %v334 = vadd.f32 0.0, %v333
    %v335 = vpop.f32.mrf.mxu0
    %336 = vmatprep.mubr.bf16.mxu0 0
    %337 = vmatmul.mubr.bf16.gmra.mxu0 %v193
    %v338 = vpop.f32.mrf.mxu0
    %v339 = vadd.f32 0.0, %v338
    %v340 = vpop.f32.mrf.mxu0
    %v341 = vpop.f32.mrf.mxu0
    %v342 = vadd.f32 0.0, %v341
    %v343 = vpop.f32.mrf.mxu0
    %344 = vmatprep.mubr.bf16.mxu0 0
    %345 = vmatmul.mubr.bf16.gmra.mxu0 %v196
    %v346 = vpop.f32.mrf.mxu0
    %v347 = vadd.f32 0.0, %v346
    %v348 = vpop.f32.mrf.mxu0
    %v349 = vpop.f32.mrf.mxu0
    %v350 = vadd.f32 0.0, %v349
    %v351 = vpop.f32.mrf.mxu0
    %352 = vmatprep.mubr.bf16.mxu0 0
    %353 = vmatmul.mubr.bf16.gmra.mxu0 %v199
    %v354 = vpop.f32.mrf.mxu0
    %v355 = vadd.f32 0.0, %v354
    %v356 = vpop.f32.mrf.mxu0
    %v357 = vpop.f32.mrf.mxu0
    %v358 = vadd.f32 0.0, %v357
    %v359 = vpop.f32.mrf.mxu0
    %360 = vmatprep.mubr.bf16.mxu0 0
    %361 = vmatmul.mubr.bf16.gmra.mxu0 %v202
    %v362 = vpop.f32.mrf.mxu0
    %v363 = vadd.f32 0.0, %v362
    %v364 = vpop.f32.mrf.mxu0
    %v365 = vpop.f32.mrf.mxu0
    %v366 = vadd.f32 0.0, %v365
    %v367 = vpop.f32.mrf.mxu0
    %368 = vdwg.mxu0
    %v369 = vmax.f32 %v243, 0.0
    %v370 = vmax.f32 %v246, 0.0
    %v371 = vmax.f32 %v251, 0.0
    %v372 = vmax.f32 %v254, 0.0
    %v373 = vmax.f32 %v259, 0.0
    %v374 = vmax.f32 %v262, 0.0
    %v375 = vmax.f32 %v267, 0.0
    %v376 = vmax.f32 %v270, 0.0
    %v377 = vmax.f32 %v275, 0.0
    %v378 = vmax.f32 %v278, 0.0
    %v379 = vmax.f32 %v283, 0.0
    %v380 = vmax.f32 %v286, 0.0
    %v381 = vmax.f32 %v291, 0.0
    %v382 = vmax.f32 %v294, 0.0
    %v383 = vmax.f32 %v299, 0.0
    %v384 = vmax.f32 %v302, 0.0
    %v385 = vmax.f32 %v307, 0.0
    %v386 = vmax.f32 %v310, 0.0
    %v387 = vmax.f32 %v315, 0.0
    %v388 = vmax.f32 %v318, 0.0
    %v389 = vmax.f32 %v323, 0.0
    %v390 = vmax.f32 %v326, 0.0
    %v391 = vmax.f32 %v331, 0.0
    %v392 = vmax.f32 %v334, 0.0
    %v393 = vmax.f32 %v339, 0.0
    %v394 = vmax.f32 %v342, 0.0
    %v395 = vmax.f32 %v347, 0.0
    %v396 = vmax.f32 %v350, 0.0
    %v397 = vmax.f32 %v355, 0.0
    %v398 = vmax.f32 %v358, 0.0
    %v399 = vmax.f32 %v363, 0.0
    %v400 = vmax.f32 %v366, 0.0
    %v401 = vadd.f32 %v369, %v370
    %v402 = vadd.f32 %v401, %v371
    %v403 = vadd.f32 %v402, %v372
    %v404 = vadd.f32 %v403, %v373
    %v405 = vadd.f32 %v404, %v374
    %v406 = vadd.f32 %v405, %v375
    %v407 = vadd.f32 %v406, %v376
    %v408 = vadd.f32 %v407, %v377
    %v409 = vadd.f32 %v408, %v378
    %v410 = vadd.f32 %v409, %v379
    %v411 = vadd.f32 %v410, %v380
    %v412 = vadd.f32 %v411, %v381
    %v413 = vadd.f32 %v412, %v382
    %v414 = vadd.f32 %v413, %v383
    %v415 = vadd.f32 %v414, %v384
    %v416 = vadd.f32 %v415, %v385
    %v417 = vadd.f32 %v416, %v386
    %v418 = vadd.f32 %v417, %v387
    %v419 = vadd.f32 %v418, %v388
    %v420 = vadd.f32 %v419, %v389
    %v421 = vadd.f32 %v420, %v390
    %v422 = vadd.f32 %v421, %v391
    %v423 = vadd.f32 %v422, %v392
    %v424 = vadd.f32 %v423, %v393
    %v425 = vadd.f32 %v424, %v394
    %v426 = vadd.f32 %v425, %v395
    %v427 = vadd.f32 %v426, %v396
    %v428 = vadd.f32 %v427, %v397
    %v429 = vadd.f32 %v428, %v398
    %v430 = vadd.f32 %v429, %v399
    %v431 = vadd.f32 %v430, %v400
    %v432 = vrot.slane %v431, 4
    %v433 = vadd.f32 %v431, %v432
    %v434 = vrot.slane %v433, 2
    %v435 = vadd.f32 %v433, %v434
    %v436 = vrot.slane %v435, 1
    %v437 = vadd.f32 %v435, %v436
    %v438 = vrcp.pop 256.0
    %v439 = vmul.f32 %v437, %v438
    %s440 = scalar_lea.vmem %s2, %s18
    %441 = vst [vmem:[%s440] sm:$0x1] %v439
  $region14: #{_features_gap_impl.1} parent=0 // loop_footer
    %s22 = sadd.s32 1, %s18
  $region15: #{_features_gap_impl.1} parent=0 // loop_footer_branch
    %17 = sbr.rel target = $region11
  $region16: #{_features_gap_impl.1} parent=0 // loop_exit
    _
  // Predicated region
  $region17: #{_features_gap_impl.1} parent=0 // pred_check
    _
  $region18: #{_features_gap_impl.1} parent=0 // pred_check_branch
    %443 = sbr.rel (0) target = $region20
  $region19: #{_features_gap_impl.1} parent=0 // pred_region
    _
  $region20: #{_features_gap_impl.1} parent=0 // pred_fallthru
    _
  // Predicated region
  $region21: #{_features_gap_impl.1} parent=0 // pred_check
    _
  $region22: #{_features_gap_impl.1} parent=0 // pred_check_branch
    %445 = sbr.rel (0) target = $region24
  $region23: #{_features_gap_impl.1} parent=0 // pred_region
    _
  $region24: #{_features_gap_impl.1} parent=0 // pred_fallthru
    _

</llo_original>
